<compile_context>
chip_gen: v6e
topology: v6e:2x2x1
jax: 0.10.0
libtpu: 0.0.40
codegen_flags: <defaults>
</compile_context>

<pallas_src>
import jax
import jax.numpy as jnp
from jax.experimental import pallas as pl
from jax.experimental.pallas import tpu as pltpu

EPS = 1e-6  # matches F.pairwise_distance default


def _pad(n, m):
    return ((n + m - 1) // m) * m


def _largest_divisor_leq(n, cap, multiple_of=1):
    cap = max(1, min(n, cap))
    for d in range(cap, 0, -1):
        if n % d == 0 and d % multiple_of == 0:
            return d
    return None


def _choose_tb(B, cap):
    """Batch tile: whole batch if small, else a divisor of B that is a multiple of 8."""
    if B <= cap:
        return B
    tb = _largest_divisor_leq(B, cap, multiple_of=8)
    return tb if tb is not None else B


def _choose_tn(N, cap):
    tn = _largest_divisor_leq(N, cap)
    return tn if tn is not None else 1


def _mnr_loss_kernel(margin):
    def kernel(a_ref, p_ref, n_ref, o_ref, pos_sc, acc_sc, aeps_sc):
        k = pl.program_id(1)  # reduction axis over negative-tiles ("arbitrary")

        @pl.when(k == 0)
        def _():
            a = a_ref[...].astype(jnp.float32)                       # (TB, D)
            p = p_ref[...].astype(jnp.float32)                       # (TB, D)
            d = a - p + EPS
            # anchor <-> positive distance, computed once per B-tile
            pos_sc[...] = jnp.sqrt(
                jnp.sum(d * d, axis=-1, keepdims=True))[None]        # (1, TB, 1)
            # hoist the loop-invariant "+ EPS" (and f32 cast) out of the k-loop
            aeps_sc[...] = a + EPS                                   # (TB, D)
            acc_sc[...] = jnp.zeros_like(acc_sc)                     # (1, TB, 1)

        # distances anchor <-> the TN negatives streamed into this block
        dn = aeps_sc[...][None, :, :] - n_ref[...].astype(jnp.float32)   # (TN, TB, D)
        neg_dist = jnp.sqrt(jnp.sum(dn * dn, axis=-1, keepdims=True))    # (TN, TB, 1)

        # relu(pos - neg + margin); reduce the TN axis now (cheap vreg adds) so
        # the resident accumulator stays (1, TB, 1) regardless of TN.
        hinge = jnp.maximum(pos_sc[...] - neg_dist + margin, 0.0)        # (TN, TB, 1)
        acc_sc[...] += jnp.sum(hinge, axis=0, keepdims=True)             # (1, TB, 1)

        @pl.when(k == pl.num_programs(1) - 1)
        def _():
            # single cross-sublane reduction -> per-B-tile partial sum
            o_ref[...] = jnp.sum(acc_sc[...], keepdims=True)             # (1, 1, 1)

    return kernel


def mnr_loss(anchor, positive, negatives, margin=1.0, *, max_tb=256, max_tn=None):
    """anchor, positive: (B, D); negatives: (N, B, D). Returns scalar f32."""
    B, D = anchor.shape
    N = negatives.shape[0]
    assert negatives.shape == (N, B, D)

    TB = _choose_tb(B, max_tb)
    a_isz = jnp.dtype(anchor.dtype).itemsize
    n_isz = jnp.dtype(negatives.dtype).itemsize

    if max_tn is None:
        # ~4 MiB per streamed negatives block (pipeline double-buffers it);
        # large enough to sit near the HBM roofline.
        max_tn = max(1, (4 * 1024 * 1024) // max(1, TB * D * n_isz))
    TN = _choose_tn(N, max_tn)

    num_b = B // TB
    num_n = N // TN

    # VMEM estimate (double-buffered inputs + scratch), with headroom.
    tbp = _pad(TB, 8)
    dpad = _pad(D, 128)
    est = (2 * 2 * tbp * dpad * a_isz      # anchor + positive (double-buffered)
           + 2 * TN * tbp * dpad * n_isz   # negatives (double-buffered)
           + tbp * dpad * 4                # a + eps (f32) scratch
           + 2 * tbp * 128 * 4             # pos / acc scratch (lane-padded)
           + 2 * 8 * 128 * 4)              # output block
    vmem_limit = int(min(56 * 1024 * 1024, max(32 * 1024 * 1024, 2 * est)))

    out = pl.pallas_call(
        _mnr_loss_kernel(float(margin)),
        out_shape=jax.ShapeDtypeStruct((num_b, 1, 1), jnp.float32),
        grid_spec=pltpu.PrefetchScalarGridSpec(
            num_scalar_prefetch=0,
            grid=(num_b, num_n),
            in_specs=[
                pl.BlockSpec((TB, D), lambda b, k: (b, 0)),          # anchor (resident per B-tile)
                pl.BlockSpec((TB, D), lambda b, k: (b, 0)),          # positive (resident per B-tile)
                pl.BlockSpec((TN, TB, D), lambda b, k: (k, b, 0)),   # TN negatives per step
            ],
            out_specs=pl.BlockSpec((1, 1, 1), lambda b, k: (b, 0, 0)),
            scratch_shapes=[
                pltpu.VMEM((1, TB, 1), jnp.float32),   # pos_dist per row
                pltpu.VMEM((1, TB, 1), jnp.float32),   # running per-row loss sums
                pltpu.VMEM((TB, D), jnp.float32),      # anchor + eps (f32), hoisted
            ],
        ),
        compiler_params=pltpu.CompilerParams(
            dimension_semantics=("parallel", "arbitrary"),  # B-tiles parallel, negatives reduced
            vmem_limit_bytes=vmem_limit,
        ),
    )(anchor, positive, negatives)

    # final sum over B-tile partials + mean scaling done in plain JAX
    return jnp.sum(out) / (B * N)


def mnr_loss_ref(anchor, positive, negatives, margin=1.0):
    pos = jnp.sqrt(jnp.sum((anchor - positive + EPS) ** 2, axis=-1))          # (B,)
    neg = jnp.sqrt(jnp.sum((anchor[None] - negatives + EPS) ** 2, axis=-1))   # (N, B)
    losses = jnp.maximum(pos[None, :] - neg + margin, 0.0)                    # (N, B)
    return jnp.mean(losses)


if __name__ == "__main__":
    B, D, N = 16, 64, 12
    key = jax.random.PRNGKey(0)
    ka, kp, kn = jax.random.split(key, 3)
    anchor = jax.random.normal(ka, (B, D), dtype=jnp.float32)
    positive = jax.random.normal(kp, (B, D), dtype=jnp.float32)
    negatives = jax.random.normal(kn, (N, B, D), dtype=jnp.float32)

    ref = mnr_loss_ref(anchor, positive, negatives, margin=1.0)

    # 1) small tiles: exercises the parallel batch-tile axis and multi-step
    #    accumulation over negatives (grid = (2, 3)).
    loss_tiled = mnr_loss(anchor, positive, negatives, margin=1.0, max_tb=8, max_tn=4)
    jax.block_until_ready(loss_tiled)
    assert jnp.allclose(loss_tiled, ref, atol=3e-5, rtol=3e-5), (loss_tiled, ref)

    # 2) default (auto) tiles: whole problem in one grid step.
    loss_auto = mnr_loss(anchor, positive, negatives, margin=1.0)
    jax.block_until_ready(loss_auto)
    assert jnp.allclose(loss_auto, ref, atol=3e-5, rtol=3e-5), (loss_auto, ref)

    print("KERNEL_OK")
</pallas_src>

<mosaic_0001>
module attributes {stable_mosaic.version = 11 : i64} {
  func.func @kernel(%arg0: i32, %arg1: i32, %arg2: memref<8x64xf32, #tpu.memory_space<vmem>>, %arg3: memref<8x64xf32, #tpu.memory_space<vmem>>, %arg4: memref<4x8x64xf32, #tpu.memory_space<vmem>>, %arg5: memref<1x1x1xf32, #tpu.memory_space<vmem>>, %arg6: memref<1x8x1xf32, #tpu.memory_space<vmem>>, %arg7: memref<1x8x1xf32, #tpu.memory_space<vmem>>, %arg8: memref<8x64xf32, #tpu.memory_space<vmem>>) attributes {dimension_semantics = [#tpu.dimension_semantics<parallel>, #tpu.dimension_semantics<arbitrary>], iteration_bounds = array<i64: 2, 3>, scalar_prefetch = 0 : i64, scratch_operands = 3 : i64, tpu.core_type = #tpu.core_type<tc>, window_params = [{transform_indices = @transform_0, window_bounds = array<i64: 8, 64>}, {transform_indices = @transform_1, window_bounds = array<i64: 8, 64>}, {transform_indices = @transform_2, window_bounds = array<i64: 4, 8, 64>}, {transform_indices = @transform_3, window_bounds = array<i64: 1, 1, 1>}]} {
    %c0_i32 = arith.constant 0 : i32
    %0 = arith.cmpi eq, %arg1, %c0_i32 : i32
    %1 = arith.extui %0 : i1 to i32
    %c0_i32_0 = arith.constant 0 : i32
    %2 = arith.cmpi ne, %1, %c0_i32_0 : i32
    scf.if %2 {
      %c0_18 = arith.constant 0 : index
      %c0_19 = arith.constant 0 : index
      %27 = vector.load %arg2[%c0_18, %c0_19] : memref<8x64xf32, #tpu.memory_space<vmem>>, vector<8x64xf32>
      %c0_20 = arith.constant 0 : index
      %c0_21 = arith.constant 0 : index
      %28 = vector.load %arg3[%c0_20, %c0_21] : memref<8x64xf32, #tpu.memory_space<vmem>>, vector<8x64xf32>
      %29 = arith.subf %27, %28 : vector<8x64xf32>
      %cst_22 = arith.constant 9.99999997E-7 : f32
      %30 = vector.broadcast %cst_22 : f32 to vector<8x64xf32>
      %31 = arith.addf %29, %30 : vector<8x64xf32>
      %32 = arith.mulf %31, %31 : vector<8x64xf32>
      %cst_23 = arith.constant dense<0.000000e+00> : vector<8xf32>
      %33 = vector.multi_reduction <add>, %32, %cst_23 [1] : vector<8x64xf32> to vector<8xf32>
      %34 = vector.shape_cast %33 : vector<8xf32> to vector<8x1xf32>
      %35 = math.sqrt %34 : vector<8x1xf32>
      %36 = vector.shape_cast %35 : vector<8x1xf32> to vector<1x8x1xf32>
      %c0_24 = arith.constant 0 : index
      %c0_25 = arith.constant 0 : index
      %c0_26 = arith.constant 0 : index
      %37 = vector.load %arg6[%c0_24, %c0_25, %c0_26] : memref<1x8x1xf32, #tpu.memory_space<vmem>>, vector<1x8x1xf32>
      tpu.vector_store %arg6[%c0_24, %c0_25, %c0_26], %36 {strides = array<i32>} : memref<1x8x1xf32, #tpu.memory_space<vmem>>, vector<1x8x1xf32>,
      %cst_27 = arith.constant 9.99999997E-7 : f32
      %38 = vector.broadcast %cst_27 : f32 to vector<8x64xf32>
      %39 = arith.addf %27, %38 : vector<8x64xf32>
      %c0_28 = arith.constant 0 : index
      %c0_29 = arith.constant 0 : index
      %40 = vector.load %arg8[%c0_28, %c0_29] : memref<8x64xf32, #tpu.memory_space<vmem>>, vector<8x64xf32>
      tpu.vector_store %arg8[%c0_28, %c0_29], %39 {strides = array<i32>} : memref<8x64xf32, #tpu.memory_space<vmem>>, vector<8x64xf32>,
      %cst_30 = arith.constant 0.000000e+00 : f32
      %41 = vector.broadcast %cst_30 : f32 to vector<1x8x1xf32>
      %c0_31 = arith.constant 0 : index
      %c0_32 = arith.constant 0 : index
      %c0_33 = arith.constant 0 : index
      %42 = vector.load %arg7[%c0_31, %c0_32, %c0_33] : memref<1x8x1xf32, #tpu.memory_space<vmem>>, vector<1x8x1xf32>
      tpu.vector_store %arg7[%c0_31, %c0_32, %c0_33], %41 {strides = array<i32>} : memref<1x8x1xf32, #tpu.memory_space<vmem>>, vector<1x8x1xf32>,
    } else {
    }
    %c0 = arith.constant 0 : index
    %c0_1 = arith.constant 0 : index
    %3 = vector.load %arg8[%c0, %c0_1] : memref<8x64xf32, #tpu.memory_space<vmem>>, vector<8x64xf32>
    %4 = vector.shape_cast %3 : vector<8x64xf32> to vector<1x8x64xf32>
    %c0_2 = arith.constant 0 : index
    %c0_3 = arith.constant 0 : index
    %c0_4 = arith.constant 0 : index
    %5 = vector.load %arg4[%c0_2, %c0_3, %c0_4] : memref<4x8x64xf32, #tpu.memory_space<vmem>>, vector<4x8x64xf32>
    %6 = vector.broadcast %4 : vector<1x8x64xf32> to vector<4x8x64xf32>
    %7 = arith.subf %6, %5 : vector<4x8x64xf32>
    %8 = arith.mulf %7, %7 : vector<4x8x64xf32>
    %cst = arith.constant dense<0.000000e+00> : vector<4x8xf32>
    %9 = vector.multi_reduction <add>, %8, %cst [2] : vector<4x8x64xf32> to vector<4x8xf32>
    %10 = vector.shape_cast %9 : vector<4x8xf32> to vector<4x8x1xf32>
    %11 = math.sqrt %10 : vector<4x8x1xf32>
    %c0_5 = arith.constant 0 : index
    %c0_6 = arith.constant 0 : index
    %c0_7 = arith.constant 0 : index
    %12 = vector.load %arg6[%c0_5, %c0_6, %c0_7] : memref<1x8x1xf32, #tpu.memory_space<vmem>>, vector<1x8x1xf32>
    %13 = vector.broadcast %12 : vector<1x8x1xf32> to vector<4x8x1xf32>
    %14 = arith.subf %13, %11 : vector<4x8x1xf32>
    %cst_8 = arith.constant 1.000000e+00 : f32
    %15 = vector.broadcast %cst_8 : f32 to vector<4x8x1xf32>
    %16 = arith.addf %14, %15 : vector<4x8x1xf32>
    %cst_9 = arith.constant 0.000000e+00 : f32
    %17 = vector.broadcast %cst_9 : f32 to vector<4x8x1xf32>
    %18 = arith.maximumf %16, %17 : vector<4x8x1xf32>
    %c0_10 = arith.constant 0 : index
    %c0_11 = arith.constant 0 : index
    %c0_12 = arith.constant 0 : index
    %19 = vector.load %arg7[%c0_10, %c0_11, %c0_12] : memref<1x8x1xf32, #tpu.memory_space<vmem>>, vector<1x8x1xf32>
    %cst_13 = arith.constant dense<0.000000e+00> : vector<8x1xf32>
    %20 = vector.multi_reduction <add>, %18, %cst_13 [0] : vector<4x8x1xf32> to vector<8x1xf32>
    %21 = vector.shape_cast %20 : vector<8x1xf32> to vector<1x8x1xf32>
    %22 = arith.addf %19, %21 : vector<1x8x1xf32>
    %c0_14 = arith.constant 0 : index
    %c0_15 = arith.constant 0 : index
    %c0_16 = arith.constant 0 : index
    %23 = vector.load %arg7[%c0_14, %c0_15, %c0_16] : memref<1x8x1xf32, #tpu.memory_space<vmem>>, vector<1x8x1xf32>
    tpu.vector_store %arg7[%c0_14, %c0_15, %c0_16], %22 {strides = array<i32>} : memref<1x8x1xf32, #tpu.memory_space<vmem>>, vector<1x8x1xf32>,
    %c2_i32 = arith.constant 2 : i32
    %24 = arith.cmpi eq, %arg1, %c2_i32 : i32
    %25 = arith.extui %24 : i1 to i32
    %c0_i32_17 = arith.constant 0 : i32
    %26 = arith.cmpi ne, %25, %c0_i32_17 : i32
    scf.if %26 {
      %c0_18 = arith.constant 0 : index
      %c0_19 = arith.constant 0 : index
      %c0_20 = arith.constant 0 : index
      %27 = vector.load %arg7[%c0_18, %c0_19, %c0_20] : memref<1x8x1xf32, #tpu.memory_space<vmem>>, vector<1x8x1xf32>
      %28 = vector.shape_cast %27 : vector<1x8x1xf32> to vector<1x1x8x1xf32>
      %cst_21 = arith.constant dense<0.000000e+00> : vector<1xf32>
      %29 = vector.multi_reduction <add>, %28, %cst_21 [1, 2, 3] : vector<1x1x8x1xf32> to vector<1xf32>
      %30 = vector.shape_cast %29 : vector<1xf32> to vector<1x1x1x1xf32>
      %31 = vector.extract %30[0, 0, 0, 0] : f32 from vector<1x1x1x1xf32>
      %32 = vector.broadcast %31 : f32 to vector<1x1x1xf32>
      %c0_22 = arith.constant 0 : index
      %c0_23 = arith.constant 0 : index
      %c0_24 = arith.constant 0 : index
      %33 = vector.load %arg5[%c0_22, %c0_23, %c0_24] : memref<1x1x1xf32, #tpu.memory_space<vmem>>, vector<1x1x1xf32>
      tpu.vector_store %arg5[%c0_22, %c0_23, %c0_24], %32 {strides = array<i32>} : memref<1x1x1xf32, #tpu.memory_space<vmem>>, vector<1x1x1xf32>,
    } else {
    }
    return
  }
  func.func @transform_0(%arg0: i32, %arg1: i32) -> (i32, i32) {
    %c0_i32 = arith.constant 0 : i32
    %c0_i32_0 = arith.constant 0 : i32
    return %arg0, %c0_i32 : i32, i32
  }
  func.func @transform_1(%arg0: i32, %arg1: i32) -> (i32, i32) {
    %c0_i32 = arith.constant 0 : i32
    %c0_i32_0 = arith.constant 0 : i32
    return %arg0, %c0_i32 : i32, i32
  }
  func.func @transform_2(%arg0: i32, %arg1: i32) -> (i32, i32, i32) {
    %c0_i32 = arith.constant 0 : i32
    %c0_i32_0 = arith.constant 0 : i32
    return %arg1, %arg0, %c0_i32 : i32, i32, i32
  }
  func.func @transform_3(%arg0: i32, %arg1: i32) -> (i32, i32, i32) {
    %c0_i32 = arith.constant 0 : i32
    %c0_i32_0 = arith.constant 0 : i32
    %c0_i32_1 = arith.constant 0 : i32
    return %arg0, %c0_i32, %c0_i32_0 : i32, i32, i32
  }
}

</mosaic_0001>

<llo_original>
// kernel: tpu_custom_call.1
$region0: #{tpu_custom_call.1}
  #allocation0 [shape = 'u32[]', space=smem, size = 0x4, offset = 0x4, fixed_abs, tag = 'smem constant byte address 0x4 - core index']
  #allocation1 [shape = 'u32[144,128]{1,0:T(1,128)}', space=vmem, size = 0x12000, scoped, tag = 'internal scratch']
  #allocation2 [shape = 'f32[1,8,1]{2,1,0:T(8,128)}', space=vmem, size = 0x1000, scoped, tag = 'scratch operand']
  #allocation3 [shape = 'f32[1,8,1]{2,1,0:T(8,128)}', space=vmem, size = 0x1000, scoped, tag = 'scratch operand']
  #allocation4 [shape = 'f32[8,64]{1,0:T(8,128)}', space=vmem, size = 0x1000, scoped, tag = 'scratch operand']
  %s0 = inlined_call_operand.hbm [shape: f32[16,64], index: 0, kind: input, shape index: {}]
  %s1 = inlined_call_operand.hbm [shape: f32[16,64], index: 1, kind: input, shape index: {}]
  %s2 = inlined_call_operand.hbm [shape: f32[12,16,64], index: 2, kind: input, shape index: {}]
  %s3 = inlined_call_operand.vmem [shape: f32[2,1,1], index: 3, kind: output, shape index: {}]
  %s4 = sld [smem:[#allocation0]]
  $region65: #{tpu_custom_call.1} parent=0
    _
  %s6 = ssub.s32 1, %s4
  %s7 = scalar_select 0, %s6, %s4
  $region1: #{tpu_custom_call.1} parent=0
    #allocation5 [shape = 'u8[8192]{0}', space=vmem, size = 0x2000, scoped, tag = 'input window, operand 0']
    #allocation6 [shape = 's32[2]{0}', space=sflag, size = 0x8, scoped, tag = 'scoped memory for tpu_custom_call.1']
    #allocation7 [shape = 'u8[8192]{0}', space=vmem, size = 0x2000, scoped, tag = 'input window, operand 1']
    #allocation8 [shape = 's32[2]{0}', space=sflag, size = 0x8, scoped, tag = 'scoped memory for tpu_custom_call.1']
    #allocation9 [shape = 'u8[32768]{0}', space=vmem, size = 0x8000, scoped, tag = 'input window, operand 2']
    %8 = vsyncpa [#allocation6], 0
    %s9 = scalar_lea.sflag [#allocation6], 1
    %10 = vsyncpa %s9, 0
    %11 = vsyncpa [#allocation8], 0
    %s12 = scalar_lea.sflag [#allocation8], 1
    %13 = vsyncpa %s12, 0
    loop: start=0, step=1, limit=8
    $region2: #{tpu_custom_call.1} parent=1 // loop_pre_header
      _
    $region3: #{tpu_custom_call.1} parent=1 // loop_header
      %s15 = sphi 0, %s19
      %p16 = scmp.ge.s32.totalorder %s15, 8
      %s22 = sphi 0, %s34
      %s23 = sphi 0, %s30
      %s24 = sphi 0, %s22
      %s25 = sphi 0, %s23
      %s26 = sphi 0, %s24
      %s27 = sphi 0, %s25
      %s37 = sphi 0, %s39
      %s40 = sphi 0, %s37
      %s41 = sphi 0, %s40
      %s57 = sphi 0, %s41
      %s63 = sphi 0, %s65
      %s66 = sphi 0, %s63
      %s67 = sphi 0, %s66
      %s83 = sphi 0, %s67
      %s91 = sphi 0, %s93
      %s94 = sphi 0, %s91
      %s95 = sphi 0, %s94
      %s111 = sphi 0, %s95
      %s117 = sphi 0, %s119
      %s120 = sphi 0, %s117
      %s121 = sphi 0, %s120
      %s137 = sphi 0, %s121
    $region4: #{tpu_custom_call.1} parent=1 // loop_header_branch
      %18 = sbr.rel (%p16) target = $region8
    $region5: #{tpu_custom_call.1} parent=1 // loop_body
      %s20 = ssub.s32 %s15, 1
      %s21 = ssub.s32 %s15, 2
      %s28 = sadd.s32 1, %s23
      %p29 = scmp.ge.s32.totalorder %s28, 3
      %s30 = scalar_select %p29, 0, %s28
      %s31 = sadd.s32 1, %s22
      %s32 = scalar_select %p29, %s31, %s22
      %p33 = scmp.ge.s32.totalorder %s32, 2
      %s34 = scalar_select %p33, 0, %s32
      %s35 = ssub.s32 %s22, %s34
      %p36 = scmp.eq.s32.totalorder %s35, 0
      %s38 = sadd.s32 %s37, 1
      %s39 = scalar_select %p36, %s37, %s38
      %p42 = pneg %p36
      %p43 = scmp.eq.s32.totalorder %s15, 5
      %p44 = por %p42, %p43
      %p45 = scmp.ne.s32.totalorder %s37, %s40
      %p46 = scmp.eq.s32.totalorder %s15, 0
      %p47 = por %p45, %p46
      %p48 = scmp.ne.s32.totalorder %s37, %s40
      %p49 = scmp.eq.s32.totalorder %s20, 5
      %p50 = por %p48, %p49
      %p51 = scmp.ne.s32.totalorder %s40, %s41
      %p52 = scmp.eq.s32.totalorder %s20, 0
      %p53 = por %p51, %p52
      %p54 = scmp.ne.s32.totalorder %s40, %s41
      %p55 = scmp.eq.s32.totalorder %s21, 5
      %p56 = por %p54, %p55
      %p58 = scmp.ne.s32.totalorder %s41, %s57
      %p59 = scmp.eq.s32.totalorder %s21, 0
      %p60 = por %p58, %p59
      %s61 = ssub.s32 %s22, %s34
      %p62 = scmp.eq.s32.totalorder %s61, 0
      %s64 = sadd.s32 %s63, 1
      %s65 = scalar_select %p62, %s63, %s64
      %p68 = pneg %p62
      %p69 = scmp.eq.s32.totalorder %s15, 5
      %p70 = por %p68, %p69
      %p71 = scmp.ne.s32.totalorder %s63, %s66
      %p72 = scmp.eq.s32.totalorder %s15, 0
      %p73 = por %p71, %p72
      %p74 = scmp.ne.s32.totalorder %s63, %s66
      %p75 = scmp.eq.s32.totalorder %s20, 5
      %p76 = por %p74, %p75
      %p77 = scmp.ne.s32.totalorder %s66, %s67
      %p78 = scmp.eq.s32.totalorder %s20, 0
      %p79 = por %p77, %p78
      %p80 = scmp.ne.s32.totalorder %s66, %s67
      %p81 = scmp.eq.s32.totalorder %s21, 5
      %p82 = por %p80, %p81
      %p84 = scmp.ne.s32.totalorder %s67, %s83
      %p85 = scmp.eq.s32.totalorder %s21, 0
      %p86 = por %p84, %p85
      %s87 = ssub.s32 %s23, %s30
      %s88 = ssub.s32 %s22, %s34
      %s89 = sor.u32 %s87, %s88
      %p90 = scmp.eq.s32.totalorder %s89, 0
      %s92 = sadd.s32 %s91, 1
      %s93 = scalar_select %p90, %s91, %s92
      %p96 = pneg %p90
      %p97 = scmp.eq.s32.totalorder %s15, 5
      %p98 = por %p96, %p97
      %p99 = scmp.ne.s32.totalorder %s91, %s94
      %p100 = scmp.eq.s32.totalorder %s15, 0
      %p101 = por %p99, %p100
      %p102 = scmp.ne.s32.totalorder %s91, %s94
      %p103 = scmp.eq.s32.totalorder %s20, 5
      %p104 = por %p102, %p103
      %p105 = scmp.ne.s32.totalorder %s94, %s95
      %p106 = scmp.eq.s32.totalorder %s20, 0
      %p107 = por %p105, %p106
      %p108 = scmp.ne.s32.totalorder %s94, %s95
      %p109 = scmp.eq.s32.totalorder %s21, 5
      %p110 = por %p108, %p109
      %p112 = scmp.ne.s32.totalorder %s95, %s111
      %p113 = scmp.eq.s32.totalorder %s21, 0
      %p114 = por %p112, %p113
      %s115 = ssub.s32 %s22, %s34
      %p116 = scmp.eq.s32.totalorder %s115, 0
      %s118 = sadd.s32 %s117, 1
      %s119 = scalar_select %p116, %s117, %s118
      %p122 = pneg %p116
      %p123 = scmp.eq.s32.totalorder %s15, 5
      %p124 = por %p122, %p123
      %p125 = scmp.ne.s32.totalorder %s117, %s120
      %p126 = scmp.eq.s32.totalorder %s15, 0
      %p127 = por %p125, %p126
      %p128 = scmp.ne.s32.totalorder %s117, %s120
      %p129 = scmp.eq.s32.totalorder %s20, 5
      %p130 = por %p128, %p129
      %p131 = scmp.ne.s32.totalorder %s120, %s121
      %p132 = scmp.eq.s32.totalorder %s20, 0
      %p133 = por %p131, %p132
      %p134 = scmp.ne.s32.totalorder %s120, %s121
      %p135 = scmp.eq.s32.totalorder %s21, 5
      %p136 = por %p134, %p135
      %p138 = scmp.ne.s32.totalorder %s121, %s137
      %p139 = scmp.eq.s32.totalorder %s21, 0
      %p140 = por %p138, %p139
      %p141 = scmp.le.s32.totalorder 1, %s15
      %p142 = scmp.lt.s32.totalorder %s15, 7
      %p143 = pnand %p141, %p142
      %p144 = pneg %p143
      // Predicated region
      $region9: #{tpu_custom_call.1} parent=5 // pred_check
        _
      $region10: #{tpu_custom_call.1} parent=5 // pred_check_branch
        %146 = sbr.rel (%p143) target = $region12
      $region11: #{tpu_custom_call.1} parent=5 // pred_region
        %s147 = ssub.s32 %s15, 1
      $region12: #{tpu_custom_call.1} parent=5 // pred_fallthru
        _
      %p148 = scmp.lt.s32.totalorder %s15, 6
      // Predicated region
      $region13: #{tpu_custom_call.1} parent=5 // pred_check
        %p149 = pneg %p148
      $region14: #{tpu_custom_call.1} parent=5 // pred_check_branch
        %151 = sbr.rel (%p149) target = $region16
      $region15: #{tpu_custom_call.1} parent=5 // pred_region
        // Predicated region
        $region17: #{tpu_custom_call.1} parent=15 // pred_check
          %p152 = pneg %p47
        $region18: #{tpu_custom_call.1} parent=15 // pred_check_branch
          %154 = sbr.rel (%p152) target = $region20
        $region19: #{tpu_custom_call.1} parent=15 // pred_region
          %s155 = sand.u32 %s37, 1
          %s156 = scalar_lea.sflag [#allocation6], %s155
          %s157 = sand.u32 %s37, 1
          %s158 = smul.addr %s157, 8
          %s159 = scalar_lea.vmem [#allocation5], %s158
          %s161 = ssub.s32 128, 128
          %162 = vsyncadd %s156, %s161
          %s163 = smul.addr %s22, 128
          %s164 = scalar_lea.hbm %s0, %s163
          %s166 = sshll.u32 %s159, 4
          %s167 = int_to_ptr.vmem [resolvable:$true] %s166
          %169 = dma.hbm_to_vmem [thread:$0]  %s164, 128, %s167, %s156
        $region20: #{tpu_custom_call.1} parent=15 // pred_fallthru
          _
        // Predicated region
        $region21: #{tpu_custom_call.1} parent=15 // pred_check
          %p170 = pneg %p73
        $region22: #{tpu_custom_call.1} parent=15 // pred_check_branch
          %172 = sbr.rel (%p170) target = $region24
        $region23: #{tpu_custom_call.1} parent=15 // pred_region
          %s173 = sand.u32 %s15, 1
          %s174 = scalar_lea.sflag [#allocation8], %s173
          %s175 = sand.u32 %s63, 1
          %s176 = smul.addr %s175, 8
          %s177 = scalar_lea.vmem [#allocation7], %s176
          %s179 = ssub.s32 128, 128
          %180 = vsyncadd %s174, %s179
          %s181 = smul.addr %s22, 128
          %s182 = scalar_lea.hbm %s1, %s181
          %s184 = sshll.u32 %s177, 4
          %s185 = int_to_ptr.vmem [resolvable:$true] %s184
          %187 = dma.hbm_to_vmem [thread:$0]  %s182, 128, %s185, %s174
        $region24: #{tpu_custom_call.1} parent=15 // pred_fallthru
          _
        // Predicated region
        $region25: #{tpu_custom_call.1} parent=15 // pred_check
          %p188 = pneg %p101
        $region26: #{tpu_custom_call.1} parent=15 // pred_check_branch
          %190 = sbr.rel (%p188) target = $region28
        $region27: #{tpu_custom_call.1} parent=15 // pred_region
          %s191 = sand.u32 %s15, 1
          %s192 = scalar_lea.sflag [#allocation8], %s191
          %s193 = sand.u32 %s91, 1
          %s194 = smul.addr %s193, 32
          %s195 = scalar_lea.vmem [#allocation9], %s194
          %s196 = smul.u32 4, %s23
          %s198 = ssub.s32 512, 512
          %199 = vsyncadd %s192, %s198
          %s200 = smul.addr %s196, 2
          %s201 = sadd.s32 %s22, %s200
          %s202 = smul.addr %s201, 128
          %s203 = scalar_lea.hbm %s2, %s202
          %s204 = sshll.u32 %s195, 4
          %s205 = int_to_ptr.vmem [resolvable:$true] %s204
          %210 = dma.hbm_to_vmem [thread:$0]  %s203, 512, %s205, %s192, 256, 128, 8
        $region28: #{tpu_custom_call.1} parent=15 // pred_fallthru
          _
      $region16: #{tpu_custom_call.1} parent=5 // pred_fallthru
        _
      %p211 = scmp.le.s32.totalorder 1, %s15
      %p212 = scmp.lt.s32.totalorder %s15, 7
      %p213 = pnand %p211, %p212
      %p214 = pneg %p213
      // Predicated region
      $region29: #{tpu_custom_call.1} parent=5 // pred_check
        _
      $region30: #{tpu_custom_call.1} parent=5 // pred_check_branch
        %216 = sbr.rel (%p213) target = $region32
      $region31: #{tpu_custom_call.1} parent=5 // pred_region
        %s217 = ssub.s32 %s15, 1
        %s218 = sand.u32 %s40, 1
        %s219 = scalar_lea.sflag [#allocation6], %s218
        %s220 = sand.u32 %s40, 1
        %s221 = smul.addr %s220, 8
        %s222 = scalar_lea.vmem [#allocation5], %s221
        // Predicated region
        $region33: #{tpu_custom_call.1} parent=31 // pred_check
          %p223 = pneg %p53
        $region34: #{tpu_custom_call.1} parent=31 // pred_check_branch
          %225 = sbr.rel (%p223) target = $region36
        $region35: #{tpu_custom_call.1} parent=31 // pred_region
          %226 = dma.done %s219, 128
        $region36: #{tpu_custom_call.1} parent=31 // pred_fallthru
          _
        %s227 = sand.u32 %s20, 1
        %s228 = scalar_lea.sflag [#allocation8], %s227
        %s229 = sand.u32 %s66, 1
        %s230 = smul.addr %s229, 8
        %s231 = scalar_lea.vmem [#allocation7], %s230
        // Predicated region
        $region37: #{tpu_custom_call.1} parent=31 // pred_check
          %p232 = pneg %p79
        $region38: #{tpu_custom_call.1} parent=31 // pred_check_branch
          %234 = sbr.rel (%p232) target = $region40
        $region39: #{tpu_custom_call.1} parent=31 // pred_region
          %235 = dma.done %s228, 128
        $region40: #{tpu_custom_call.1} parent=31 // pred_fallthru
          _
        %s236 = sand.u32 %s20, 1
        %s237 = scalar_lea.sflag [#allocation8], %s236
        %s238 = sand.u32 %s94, 1
        %s239 = smul.addr %s238, 32
        %s240 = scalar_lea.vmem [#allocation9], %s239
        // Predicated region
        $region41: #{tpu_custom_call.1} parent=31 // pred_check
          %p241 = pneg %p107
        $region42: #{tpu_custom_call.1} parent=31 // pred_check_branch
          %243 = sbr.rel (%p241) target = $region44
        $region43: #{tpu_custom_call.1} parent=31 // pred_region
          %244 = dma.done %s237, 512
        $region44: #{tpu_custom_call.1} parent=31 // pred_fallthru
          _
        %s245 = sand.u32 %s40, 1
        %s246 = scalar_lea.sflag [#allocation6], %s245
        %s247 = sand.u32 %s40, 1
        %s248 = smul.addr %s247, 8
        %s249 = scalar_lea.vmem [#allocation5], %s248
        %p250 = pneg %p53
        %p251 = pneg %p50
        %s252 = sand.u32 %s20, 1
        %s253 = scalar_lea.sflag [#allocation8], %s252
        %s254 = sand.u32 %s66, 1
        %s255 = smul.addr %s254, 8
        %s256 = scalar_lea.vmem [#allocation7], %s255
        %p257 = pneg %p79
        %p258 = pneg %p76
        %s259 = sand.u32 %s20, 1
        %s260 = scalar_lea.sflag [#allocation8], %s259
        %s261 = sand.u32 %s94, 1
        %s262 = smul.addr %s261, 32
        %s263 = scalar_lea.vmem [#allocation9], %s262
        %p264 = pneg %p107
        %p265 = pneg %p104
        %p266 = pneg %p133
        %p267 = pneg %p130
        %p268 = scmp.lt.s32.totalorder %s24, 1
        %s269 = scalar_select %p268, %s24, 1
        %s270 = scalar_lea.vmem %s3, %s269
        %s271 = smul.u32 4, %s25
        %p272 = scmp.lt.s32.totalorder %s24, 1
        %s273 = scalar_select %p272, %s24, 1
        %s274 = scalar_lea.vmem %s3, %s273
        %p275 = scmp.eq.s32.totalorder %s25, 0
        // Predicated region
        $region45: #{tpu_custom_call.1} parent=31 // pred_check
          %p276 = pneg %p275
        $region46: #{tpu_custom_call.1} parent=31 // pred_check_branch
          %278 = sbr.rel (%p276) target = $region48
        $region47: #{tpu_custom_call.1} parent=31 // pred_region
          %v279 = vld [vmem:[%s222] sm:$0xff]
          %v280 = vld [vmem:[%s231] sm:$0xff]
          %v281 = vsub.f32 %v279, %v280
          %v282 = vadd.f32 %v281, 1e-06
          %v283 = vmul.f32 %v282, %v282
          %vm284 = vcmask 523264
          %v285 = vsel %vm284, %v283, 0.0
          %286 = vadd.xlane.f32.xlu0 %v285
          %v287 = vpop.xlane.xlu0 %286
          %v288 = vrsqrt.pop %v287
          %v289 = vmul.f32 %v287, %v288
          %vm290 = vcmp.eq.f32.partialorder %v287, inf
          %v291 = vsel %vm290, %v287, %v289
          %vm292 = vcmp.eq.f32.partialorder %v287, 0.0
          %v293 = vand.u32 %v287, 2147483648
          %v294 = vsel %vm292, %v293, %v291
          %vm295 = vcmask 7168
          %296 = vst.msk [vmem:[#allocation2] sm:$0xff] %vm295, %v294
          %v297 = vadd.f32 %v279, 1e-06
          %298 = vst.msk [vmem:[#allocation4] sm:$0xff] %vm284, %v297
          %299 = vst.msk [vmem:[#allocation3] sm:$0xff] %vm295, 0.0
        $region48: #{tpu_custom_call.1} parent=31 // pred_fallthru
          _
        %v300 = vld [vmem:[#allocation4] sm:$0xff]
        %v301 = vld [vmem:[%s240] sm:$0xff]
        %v302 = vld [vmem:[%s240 + $0x8] sm:$0xff]
        %v303 = vld [vmem:[%s240 + $0x10] sm:$0xff]
        %v304 = vld [vmem:[%s240 + $0x18] sm:$0xff]
        %v305 = vsub.f32 %v300, %v301
        %v306 = vsub.f32 %v300, %v302
        %v307 = vsub.f32 %v300, %v303
        %v308 = vsub.f32 %v300, %v304
        %v309 = vmul.f32 %v305, %v305
        %v310 = vmul.f32 %v306, %v306
        %v311 = vmul.f32 %v307, %v307
        %v312 = vmul.f32 %v308, %v308
        %vm313 = vcmask 523264
        %v314 = vsel %vm313, %v309, 0.0
        %315 = vadd.xlane.f32.xlu0 %v314
        %v316 = vpop.xlane.xlu0 %315
        %v317 = vsel %vm313, %v310, 0.0
        %318 = vadd.xlane.f32.xlu0 %v317
        %v319 = vpop.xlane.xlu0 %318
        %v320 = vsel %vm313, %v311, 0.0
        %321 = vadd.xlane.f32.xlu0 %v320
        %v322 = vpop.xlane.xlu0 %321
        %v323 = vsel %vm313, %v312, 0.0
        %324 = vadd.xlane.f32.xlu0 %v323
        %v325 = vpop.xlane.xlu0 %324
        %v326 = vrsqrt.pop %v316
        %v327 = vmul.f32 %v316, %v326
        %vm328 = vcmp.eq.f32.partialorder %v316, inf
        %v329 = vsel %vm328, %v316, %v327
        %vm330 = vcmp.eq.f32.partialorder %v316, 0.0
        %v331 = vand.u32 %v316, 2147483648
        %v332 = vsel %vm330, %v331, %v329
        %v333 = vrsqrt.pop %v319
        %v334 = vmul.f32 %v319, %v333
        %vm335 = vcmp.eq.f32.partialorder %v319, inf
        %v336 = vsel %vm335, %v319, %v334
        %vm337 = vcmp.eq.f32.partialorder %v319, 0.0
        %v338 = vand.u32 %v319, 2147483648
        %v339 = vsel %vm337, %v338, %v336
        %v340 = vrsqrt.pop %v322
        %v341 = vmul.f32 %v322, %v340
        %vm342 = vcmp.eq.f32.partialorder %v322, inf
        %v343 = vsel %vm342, %v322, %v341
        %vm344 = vcmp.eq.f32.partialorder %v322, 0.0
        %v345 = vand.u32 %v322, 2147483648
        %v346 = vsel %vm344, %v345, %v343
        %v347 = vrsqrt.pop %v325
        %v348 = vmul.f32 %v325, %v347
        %vm349 = vcmp.eq.f32.partialorder %v325, inf
        %v350 = vsel %vm349, %v325, %v348
        %vm351 = vcmp.eq.f32.partialorder %v325, 0.0
        %v352 = vand.u32 %v325, 2147483648
        %v353 = vsel %vm351, %v352, %v350
        %v354 = vld [vmem:[#allocation2] sm:$0xff]
        %v355 = vsub.f32 %v354, %v332
        %v356 = vsub.f32 %v354, %v339
        %v357 = vsub.f32 %v354, %v346
        %v358 = vsub.f32 %v354, %v353
        %v359 = vadd.f32 %v355, 1.0
        %v360 = vadd.f32 %v356, 1.0
        %v361 = vadd.f32 %v357, 1.0
        %v362 = vadd.f32 %v358, 1.0
        %v363 = vmax.f32 %v359, 0.0
        %v364 = vmax.f32 %v360, 0.0
        %v365 = vmax.f32 %v361, 0.0
        %v366 = vmax.f32 %v362, 0.0
        %v367 = vld [vmem:[#allocation3] sm:$0xff]
        %vm368 = vcmask 7168
        %v369 = vsel %vm368, %v363, 0.0
        %v370 = vsel %vm368, %v364, 0.0
        %v371 = vadd.f32 %v369, %v370
        %v372 = vsel %vm368, %v365, 0.0
        %v373 = vadd.f32 %v371, %v372
        %v374 = vsel %vm368, %v366, 0.0
        %v375 = vadd.f32 %v373, %v374
        %v376 = vadd.f32 %v367, %v375
        %377 = vst.msk [vmem:[#allocation3] sm:$0xff] %vm368, %v376
        %p378 = scmp.eq.s32.totalorder %s25, 2
        // Predicated region
        $region49: #{tpu_custom_call.1} parent=31 // pred_check
          %p379 = pneg %p378
        $region50: #{tpu_custom_call.1} parent=31 // pred_check_branch
          %381 = sbr.rel (%p379) target = $region52
        $region51: #{tpu_custom_call.1} parent=31 // pred_region
          %v382 = vld [vmem:[#allocation3] sm:$0xff]
          %v383 = vsel %vm368, %v382, 0.0
          %384 = vadd.xlane.f32.xlu0 %v383
          %v385 = vpop.xlane.xlu0 %384
          %v386 = vrot.slane %v385, 4
          %v387 = vadd.f32 %v385, %v386
          %v388 = vrot.slane %v387, 2
          %v389 = vadd.f32 %v387, %v388
          %v390 = vrot.slane %v389, 1
          %v391 = vadd.f32 %v389, %v390
          %s392 = vtos %v391
          %v393 = vstv %s392
          %vm394 = vcmask 0
          %395 = vst.msk [vmem:[%s274] sm:$0x1] %vm394, %v393
        $region52: #{tpu_custom_call.1} parent=31 // pred_fallthru
          _
        %p396 = scmp.lt.s32.totalorder %s24, 1
        %s397 = scalar_select %p396, %s24, 1
        %s398 = scalar_lea.vmem %s3, %s397
        // Predicated region
        $region53: #{tpu_custom_call.1} parent=31 // pred_check
          %p399 = pneg %p130
        $region54: #{tpu_custom_call.1} parent=31 // pred_check_branch
          %401 = sbr.rel (%p399) target = $region56
        $region55: #{tpu_custom_call.1} parent=31 // pred_region
          _
        $region56: #{tpu_custom_call.1} parent=31 // pred_fallthru
          _
      $region32: #{tpu_custom_call.1} parent=5 // pred_fallthru
        _
      %p402 = scmp.le.s32.totalorder 2, %s15
      // Predicated region
      $region57: #{tpu_custom_call.1} parent=5 // pred_check
        %p403 = pneg %p402
      $region58: #{tpu_custom_call.1} parent=5 // pred_check_branch
        %405 = sbr.rel (%p403) target = $region60
      $region59: #{tpu_custom_call.1} parent=5 // pred_region
        %s406 = ssub.s32 %s15, 2
        // Predicated region
        $region61: #{tpu_custom_call.1} parent=59 // pred_check
          %p407 = pneg %p136
        $region62: #{tpu_custom_call.1} parent=59 // pred_check_branch
          %409 = sbr.rel (%p407) target = $region64
        $region63: #{tpu_custom_call.1} parent=59 // pred_region
          %p410 = scmp.lt.s32.totalorder %s26, 1
          %s411 = scalar_select %p410, %s26, 1
          %s412 = scalar_lea.vmem %s3, %s411
        $region64: #{tpu_custom_call.1} parent=59 // pred_fallthru
          _
      $region60: #{tpu_custom_call.1} parent=5 // pred_fallthru
        _
    $region6: #{tpu_custom_call.1} parent=1 // loop_footer
      %s19 = sadd.s32 1, %s15
    $region7: #{tpu_custom_call.1} parent=1 // loop_footer_branch
      %14 = sbr.rel target = $region3
    $region8: #{tpu_custom_call.1} parent=1 // loop_exit
      _
    %413 = vsyncpa [#allocation6], 1
    %s414 = scalar_lea.sflag [#allocation6], 1
    %415 = vsyncpa %s414, 1
    %416 = vsyncpa [#allocation8], 1
    %s417 = scalar_lea.sflag [#allocation8], 1
    %418 = vsyncpa %s417, 1

</llo_original>
